<compile_context>
chip_gen: v5e
topology: v5e:2x2
jax: 0.10.0
libtpu: 0.0.40
codegen_flags: <defaults>
</compile_context>

<pallas_src>
import functools

import jax
import jax.numpy as jnp
from jax.experimental import pallas as pl
from jax.experimental.pallas import tpu as pltpu

EPS = 0.001


# ----------------------------- hardware probing ------------------------------

@functools.lru_cache(maxsize=1)
def _vmem_capacity_bytes() -> int:
    """Physical VMEM per TensorCore; conservative (v7x-sized) fallback."""
    try:
        return int(pltpu.get_tpu_info().vmem_capacity_bytes)
    except Exception:
        return 64 << 20


def _budget():
    """Generation-aware tiling budget.

    Returns (pass1_cap_bytes, pass2_cap_bytes, pass2_extra_buffers, vmem_limit).
    """
    cap = _vmem_capacity_bytes()
    if cap >= (96 << 20):
        # v5e / v6e: 128 MiB physical VMEM.
        #   pass 1 streams one input tile/step: 8 MiB x 2 bufs = 16 MiB
        #   pass 2 double-buffers in + out:     6 MiB x 4 bufs = 24 MiB
        return 8 << 20, 6 << 20, None, 64 << 20
    # v7x: 64 MiB VMEM — moderate tiles, recover per-step overhead with
    # 3-deep buffering on the streaming pass.
    return 6 << 20, 3 << 20, 3, 48 << 20


def _spec(block_shape, index_map, buffers=None):
    """BlockSpec with optional multi-buffering (graceful fallback)."""
    if buffers is not None and hasattr(pl, "Buffered"):
        try:
            return pl.BlockSpec(block_shape, index_map,
                                pipeline_mode=pl.Buffered(buffers))
        except TypeError:  # older jax without pipeline_mode kwarg
            pass
    return pl.BlockSpec(block_shape, index_map)


def _pick_hw_tile(hw: int, c_block: int, itemsize: int, cap_bytes: int) -> int:
    """Lane-tile for the H*W axis: a multiple of 128 (or the full dim) sized so
    one (1, c_block, tile) buffer stays <= cap_bytes."""
    max_lanes = max(128, (cap_bytes // (itemsize * c_block)) // 128 * 128)
    if hw <= max_lanes:
        return hw                      # full-dim block is always legal
    if hw % 128 == 0:
        t = max_lanes
        while hw % t != 0 and t > 128:  # prefer an exact divisor -> no tail
            t -= 128
        if hw % t == 0:
            return t
    return max_lanes                   # cdiv grid; tail masked in the kernels


def _pick_channel_block(c: int, n: int, itemsize: int) -> int:
    """Split channels into >=2 sublane-aligned blocks when the batch axis alone
    cannot feed both v7x TensorCores (harmless on single-TC chips)."""
    sub = 8 if itemsize >= 4 else 16
    if n < 2 and c % (2 * sub) == 0:
        return c // 2
    return c


# --------------------------------- kernels -----------------------------------

def _br_stats_kernel(pilot_ref, x_ref, sum_ref, sq_ref, *, hw, t_hw, masked):
    # x_ref: (1, cb, T) tile.  sum/sq: (1, cb, 1) accumulators, resident across
    # the lane-tile grid axis (constant output index_map on that axis).
    t = pl.program_id(2)

    @pl.when(t == 0)
    def _():
        sum_ref[...] = jnp.zeros_like(sum_ref)
        sq_ref[...] = jnp.zeros_like(sq_ref)

    # Shifted accumulation (x - pilot_c): the pilot is an arbitrary per-channel
    # sample, making E[d^2] - E[d]^2 numerically safe even when |mean| >> std.
    d = x_ref[...].astype(jnp.float32) - pilot_ref[...]
    if masked:
        lane = jax.lax.broadcasted_iota(jnp.int32, d.shape, dimension=2)
        d = jnp.where(t * t_hw + lane < hw, d, 0.0)
    sum_ref[...] += jnp.sum(d, axis=-1, keepdims=True)
    sq_ref[...] += jnp.sum(d * d, axis=-1, keepdims=True)


def _br_apply_kernel(scale_ref, bias_ref, alpha_ref, x_ref, o_ref):
    # Pure streaming: y = x*scale_c + bias_c ; out = PReLU(y).
    x = x_ref[...].astype(jnp.float32)            # (1, cb, T)
    y = x * scale_ref[...] + bias_ref[...]        # (1, cb, 1) broadcasts lanes
    o_ref[...] = jnp.where(y >= 0.0, y, alpha_ref[...] * y).astype(o_ref.dtype)


def _br_fused_kernel(gamma_ref, beta_ref, alpha_ref, x_ref, o_ref, *, count):
    # Single-pass path (whole tensor resident): stats + normalize + PReLU.
    x = x_ref[...].astype(jnp.float32)            # (N, C, HW)
    pilot = x[0:1, :, 0:1]                        # (1, C, 1) shift
    d = x - pilot
    s = jnp.sum(d, axis=(0, 2), keepdims=True) * (1.0 / count)
    sq = jnp.sum(d * d, axis=(0, 2), keepdims=True) * (1.0 / count)
    var = jnp.maximum(sq - s * s, 0.0)            # biased variance
    inv_std = jax.lax.rsqrt(var + EPS)
    scale = gamma_ref[...] * inv_std
    bias = beta_ref[...] - (pilot + s) * scale
    y = x * scale + bias
    o_ref[...] = jnp.where(y >= 0.0, y, alpha_ref[...] * y).astype(o_ref.dtype)


# --------------------------------- wrapper ------------------------------------

@functools.partial(jax.jit, static_argnames=("force_two_pass", "tile_cap_bytes"))
def br_forward(x, gamma, beta, alpha, force_two_pass=False, tile_cap_bytes=None):
    """x: (N, C, H, W); gamma/beta/alpha: (C,).  Returns (N, C, H, W)."""
    n, c, h, w = x.shape
    hw = h * w
    l = n * hw
    itemsize = x.dtype.itemsize

    x3 = x.reshape(n, c, hw)  # contiguous view, no data movement

    g32 = gamma.astype(jnp.float32).reshape(1, c, 1)
    b32 = beta.astype(jnp.float32).reshape(1, c, 1)
    a32 = alpha.astype(jnp.float32).reshape(1, c, 1)

    cap1, cap2, buffers2, vmem_limit = _budget()
    if tile_cap_bytes is not None:     # test hook / manual override
        cap1 = cap2 = int(tile_cap_bytes)

    # ---- Size-gated fused single pass: 2x|x| HBM traffic instead of 3x ----
    fused_footprint = n * c * hw * (2 * itemsize + 12)   # x, out, f32 temps
    if (not force_two_pass) and fused_footprint <= (12 << 20):
        out3 = pl.pallas_call(
            functools.partial(_br_fused_kernel, count=float(l)),
            out_shape=jax.ShapeDtypeStruct((n, c, hw), x.dtype),
            compiler_params=pltpu.CompilerParams(vmem_limit_bytes=vmem_limit),
        )(g32, b32, a32, x3)
        return out3.reshape(n, c, h, w)

    # ---- Two-pass streaming path ----
    cb = _pick_channel_block(c, n, itemsize)
    n_cb = c // cb

    # Pass 1: per-(batch, channel) partial sums / sums-of-squares of (x-pilot).
    t1 = _pick_hw_tile(hw, cb, itemsize, cap1)
    n_t1 = pl.cdiv(hw, t1)
    masked1 = (hw % t1) != 0

    pilot = x3[:1, :, :1].astype(jnp.float32)   # (1, c, 1) per-channel shift

    psum, psq = pl.pallas_call(
        functools.partial(_br_stats_kernel, hw=hw, t_hw=t1, masked=masked1),
        out_shape=(
            jax.ShapeDtypeStruct((n, c, 1), jnp.float32),
            jax.ShapeDtypeStruct((n, c, 1), jnp.float32),
        ),
        grid_spec=pltpu.PrefetchScalarGridSpec(
            num_scalar_prefetch=0,
            grid=(n_cb, n, n_t1),
            in_specs=[
                pl.BlockSpec((1, cb, 1), lambda j, b, t: (0, j, 0)),    # pilot
                pl.BlockSpec((1, cb, t1), lambda j, b, t: (b, j, t)),   # x
            ],
            out_specs=[
                pl.BlockSpec((1, cb, 1), lambda j, b, t: (b, j, 0)),
                pl.BlockSpec((1, cb, 1), lambda j, b, t: (b, j, 0)),
            ],
        ),
        compiler_params=pltpu.CompilerParams(
            dimension_semantics=("parallel", "parallel", "arbitrary"),
            vmem_limit_bytes=vmem_limit,
        ),
    )(pilot, x3)

    # ---- Tiny per-channel math (O(C), done in XLA) ----
    ds = jnp.sum(psum, axis=0).reshape(1, c, 1) / l          # E[x - pilot]
    dsq = jnp.sum(psq, axis=0).reshape(1, c, 1) / l          # E[(x - pilot)^2]
    var = jnp.maximum(dsq - ds * ds, 0.0)                    # biased variance
    inv_std = jax.lax.rsqrt(var + EPS)
    mean = pilot + ds
    scale = g32 * inv_std
    bias = b32 - mean * scale

    # ---- Pass 2: streaming normalize + PReLU ----
    t2 = _pick_hw_tile(hw, cb, itemsize, cap2)
    n_t2 = pl.cdiv(hw, t2)

    out3 = pl.pallas_call(
        _br_apply_kernel,
        out_shape=jax.ShapeDtypeStruct((n, c, hw), x.dtype),
        grid_spec=pltpu.PrefetchScalarGridSpec(
            num_scalar_prefetch=0,
            grid=(n_cb, n, n_t2),
            in_specs=[
                # Per-channel params: constant index_map -> stay resident in
                # VMEM (no per-step re-DMA).
                pl.BlockSpec((1, cb, 1), lambda j, b, t: (0, j, 0)),    # scale
                pl.BlockSpec((1, cb, 1), lambda j, b, t: (0, j, 0)),    # bias
                pl.BlockSpec((1, cb, 1), lambda j, b, t: (0, j, 0)),    # alpha
                _spec((1, cb, t2), lambda j, b, t: (b, j, t), buffers2),
            ],
            out_specs=_spec((1, cb, t2), lambda j, b, t: (b, j, t), buffers2),
        ),
        compiler_params=pltpu.CompilerParams(
            dimension_semantics=("parallel", "parallel", "parallel"),
            vmem_limit_bytes=vmem_limit,
        ),
    )(scale, bias, a32, x3)

    return out3.reshape(n, c, h, w)


# -------------------------------- reference -----------------------------------

def _reference(x, gamma, beta, alpha):
    # Pure-JAX reference of training-mode BatchNorm2d + PReLU.
    xf = x.astype(jnp.float32)
    mean = jnp.mean(xf, axis=(0, 2, 3), keepdims=True)
    var = jnp.mean((xf - mean) ** 2, axis=(0, 2, 3), keepdims=True)
    y = (xf - mean) / jnp.sqrt(var + EPS)
    y = y * gamma.reshape(1, -1, 1, 1) + beta.reshape(1, -1, 1, 1)
    return jnp.where(y >= 0.0, y, alpha.reshape(1, -1, 1, 1) * y).astype(x.dtype)


# TODO(synk): BatchNorm running_mean/running_var buffer updates (module state)
# and the eval-mode path are not part of this forward-output kernel.

if __name__ == "__main__":
    key = jax.random.PRNGKey(0)
    kx, kg, kb, ka, kx2 = jax.random.split(key, 5)

    N, C, H, W = 2, 4, 16, 16
    # Non-zero mean exercises the shifted-variance formulation.
    x = jax.random.normal(kx, (N, C, H, W), dtype=jnp.float32) * 2.0 + 3.0
    gamma = 1.0 + 0.1 * jax.random.normal(kg, (C,), dtype=jnp.float32)
    beta = 0.1 * jax.random.normal(kb, (C,), dtype=jnp.float32)
    alpha = jnp.full((C,), 0.25, dtype=jnp.float32) + 0.05 * jax.random.normal(
        ka, (C,), dtype=jnp.float32
    )
    ref = _reference(x, gamma, beta, alpha)

    # Fused single-pass path (small tensors take this by default).
    out_fused = jax.block_until_ready(br_forward(x, gamma, beta, alpha))
    assert out_fused.shape == (N, C, H, W)
    assert jnp.allclose(out_fused, ref, atol=1e-4, rtol=1e-4), (
        float(jnp.max(jnp.abs(out_fused - ref)))
    )

    # Two-pass streaming path on the same input.
    out_tp = jax.block_until_ready(
        br_forward(x, gamma, beta, alpha, force_two_pass=True)
    )
    assert jnp.allclose(out_tp, ref, atol=1e-4, rtol=1e-4), (
        float(jnp.max(jnp.abs(out_tp - ref)))
    )

    # Two-pass path with a spatial extent that is not a multiple of 128 and a
    # tiny tile cap: exercises masked-tail stats, partial output blocks and
    # channel blocking (N=1 -> channels split across blocks).
    N2, C2, H2, W2 = 1, 16, 20, 20      # hw = 400
    x2 = jax.random.normal(kx2, (N2, C2, H2, W2), dtype=jnp.float32) + 1.5
    g2 = jnp.ones((C2,), jnp.float32)
    b2 = jnp.zeros((C2,), jnp.float32)
    a2 = jnp.full((C2,), 0.25, jnp.float32)
    ref2 = _reference(x2, g2, b2, a2)
    out2 = jax.block_until_ready(
        br_forward(x2, g2, b2, a2, force_two_pass=True, tile_cap_bytes=4096)
    )
    assert jnp.allclose(out2, ref2, atol=1e-4, rtol=1e-4), (
        float(jnp.max(jnp.abs(out2 - ref2)))
    )

    print("KERNEL_OK")
</pallas_src>

<mosaic_0001>
module attributes {stable_mosaic.version = 11 : i64} {
  func.func @_br_fused_kernel(%arg0: memref<1x4x1xf32, #tpu.memory_space<vmem>>, %arg1: memref<1x4x1xf32, #tpu.memory_space<vmem>>, %arg2: memref<1x4x1xf32, #tpu.memory_space<vmem>>, %arg3: memref<2x4x256xf32, #tpu.memory_space<vmem>>, %arg4: memref<2x4x256xf32, #tpu.memory_space<vmem>>) attributes {dimension_semantics = [], scalar_prefetch = 0 : i64, scratch_operands = 0 : i64, tpu.core_type = #tpu.core_type<tc>} {
    %c0 = arith.constant 0 : index
    %c0_0 = arith.constant 0 : index
    %c0_1 = arith.constant 0 : index
    %0 = vector.load %arg3[%c0, %c0_0, %c0_1] : memref<2x4x256xf32, #tpu.memory_space<vmem>>, vector<2x4x256xf32>
    %1 = vector.extract_strided_slice %0 {offsets = [0, 0, 0], sizes = [1, 4, 1], strides = [1, 1, 1]} : vector<2x4x256xf32> to vector<1x4x1xf32>
    %2 = vector.broadcast %1 : vector<1x4x1xf32> to vector<2x4x256xf32>
    %3 = arith.subf %0, %2 : vector<2x4x256xf32>
    %cst = arith.constant dense<0.000000e+00> : vector<4xf32>
    %4 = vector.multi_reduction <add>, %3, %cst [0, 2] : vector<2x4x256xf32> to vector<4xf32>
    %5 = vector.shape_cast %4 : vector<4xf32> to vector<1x4x1xf32>
    %cst_2 = arith.constant 0.001953125 : f32
    %6 = vector.broadcast %cst_2 : f32 to vector<1x4x1xf32>
    %7 = arith.mulf %5, %6 : vector<1x4x1xf32>
    %8 = arith.mulf %3, %3 : vector<2x4x256xf32>
    %cst_3 = arith.constant dense<0.000000e+00> : vector<4xf32>
    %9 = vector.multi_reduction <add>, %8, %cst_3 [0, 2] : vector<2x4x256xf32> to vector<4xf32>
    %10 = vector.shape_cast %9 : vector<4xf32> to vector<1x4x1xf32>
    %cst_4 = arith.constant 0.001953125 : f32
    %11 = vector.broadcast %cst_4 : f32 to vector<1x4x1xf32>
    %12 = arith.mulf %10, %11 : vector<1x4x1xf32>
    %13 = arith.mulf %7, %7 : vector<1x4x1xf32>
    %14 = arith.subf %12, %13 : vector<1x4x1xf32>
    %cst_5 = arith.constant 0.000000e+00 : f32
    %15 = vector.broadcast %cst_5 : f32 to vector<1x4x1xf32>
    %16 = arith.maximumf %14, %15 : vector<1x4x1xf32>
    %cst_6 = arith.constant 1.000000e-03 : f32
    %17 = vector.broadcast %cst_6 : f32 to vector<1x4x1xf32>
    %18 = arith.addf %16, %17 : vector<1x4x1xf32>
    %19 = math.rsqrt %18 : vector<1x4x1xf32>
    %c0_7 = arith.constant 0 : index
    %c0_8 = arith.constant 0 : index
    %c0_9 = arith.constant 0 : index
    %20 = vector.load %arg0[%c0_7, %c0_8, %c0_9] : memref<1x4x1xf32, #tpu.memory_space<vmem>>, vector<1x4x1xf32>
    %21 = arith.mulf %20, %19 : vector<1x4x1xf32>
    %c0_10 = arith.constant 0 : index
    %c0_11 = arith.constant 0 : index
    %c0_12 = arith.constant 0 : index
    %22 = vector.load %arg1[%c0_10, %c0_11, %c0_12] : memref<1x4x1xf32, #tpu.memory_space<vmem>>, vector<1x4x1xf32>
    %23 = arith.addf %1, %7 : vector<1x4x1xf32>
    %24 = arith.mulf %23, %21 : vector<1x4x1xf32>
    %25 = arith.subf %22, %24 : vector<1x4x1xf32>
    %26 = vector.broadcast %21 : vector<1x4x1xf32> to vector<2x4x256xf32>
    %27 = arith.mulf %0, %26 : vector<2x4x256xf32>
    %28 = vector.broadcast %25 : vector<1x4x1xf32> to vector<2x4x256xf32>
    %29 = arith.addf %27, %28 : vector<2x4x256xf32>
    %cst_13 = arith.constant 0.000000e+00 : f32
    %30 = vector.broadcast %cst_13 : f32 to vector<2x4x256xf32>
    %31 = arith.cmpf oge, %29, %30 : vector<2x4x256xf32>
    %c0_14 = arith.constant 0 : index
    %c0_15 = arith.constant 0 : index
    %c0_16 = arith.constant 0 : index
    %32 = vector.load %arg2[%c0_14, %c0_15, %c0_16] : memref<1x4x1xf32, #tpu.memory_space<vmem>>, vector<1x4x1xf32>
    %33 = vector.broadcast %32 : vector<1x4x1xf32> to vector<2x4x256xf32>
    %34 = arith.mulf %33, %29 : vector<2x4x256xf32>
    %35 = arith.select %31, %29, %34 : vector<2x4x256xi1>, vector<2x4x256xf32>
    %c0_17 = arith.constant 0 : index
    %c0_18 = arith.constant 0 : index
    %c0_19 = arith.constant 0 : index
    %36 = vector.load %arg4[%c0_17, %c0_18, %c0_19] : memref<2x4x256xf32, #tpu.memory_space<vmem>>, vector<2x4x256xf32>
    tpu.vector_store %arg4[%c0_17, %c0_18, %c0_19], %35 {strides = array<i32>} : memref<2x4x256xf32, #tpu.memory_space<vmem>>, vector<2x4x256xf32>,
    return
  }
}

</mosaic_0001>

<llo_original>
// kernel: br_forward.1
$region0: #{br_forward.1}
  #allocation0 [shape = 'u32[]', space=smem, size = 0x4, offset = 0x4, fixed_abs, tag = 'smem constant byte address 0x4 - core index']
  #allocation1 [shape = 'u32[72,128]{1,0:T(1,128)}', space=vmem, size = 0x9000, scoped, tag = 'internal scratch']
  %s0 = inlined_call_operand.vmem [shape: f32[1,4,1], index: 0, kind: input, shape index: {}]
  %s1 = inlined_call_operand.vmem [shape: f32[1,4,1], index: 1, kind: input, shape index: {}]
  %s2 = inlined_call_operand.vmem [shape: f32[1,4,1], index: 2, kind: input, shape index: {}]
  %s3 = inlined_call_operand.vmem [shape: f32[2,4,256], index: 3, kind: input, shape index: {}]
  %s4 = inlined_call_operand.vmem [shape: f32[2,4,256], index: 4, kind: output, shape index: {}]
  %s5 = sld [smem:[#allocation0]]
  $region26: #{br_forward.1} parent=0
    _
  %s7 = ssub.s32 1, %s5
  %s8 = scalar_select 0, %s7, %s5
  // Predicated region
  $region2: #{br_forward.1} parent=0 // pred_check
    _
  $region3: #{br_forward.1} parent=0 // pred_check_branch
    %10 = sbr.rel (0) target = $region5
  $region4: #{br_forward.1} parent=0 // pred_region
    _
  $region5: #{br_forward.1} parent=0 // pred_fallthru
    _
  // Predicated region
  $region6: #{br_forward.1} parent=0 // pred_check
    _
  $region7: #{br_forward.1} parent=0 // pred_check_branch
    %12 = sbr.rel (0) target = $region9
  $region8: #{br_forward.1} parent=0 // pred_region
    _
  $region9: #{br_forward.1} parent=0 // pred_fallthru
    _
  // Predicated region
  $region10: #{br_forward.1} parent=0 // pred_check
    _
  $region11: #{br_forward.1} parent=0 // pred_check_branch
    %14 = sbr.rel (0) target = $region13
  $region12: #{br_forward.1} parent=0 // pred_region
    _
  $region13: #{br_forward.1} parent=0 // pred_fallthru
    _
  // Predicated region
  $region14: #{br_forward.1} parent=0 // pred_check
    _
  $region15: #{br_forward.1} parent=0 // pred_check_branch
    %16 = sbr.rel (0) target = $region17
  $region16: #{br_forward.1} parent=0 // pred_region
    _
  $region17: #{br_forward.1} parent=0 // pred_fallthru
    _
  %v17 = vld [vmem:[%s3] sm:$0xff]
  %v18 = vld [vmem:[%s3 + $0x8] sm:$0xff]
  %20 = vset.pattern.permute.xlu0 0
  %21 = vperm.xlu0 %20, %v17
  %v22 = vpop.permute.xlu0 %21
  %v25 = vunpack.c.l.s4 839922192
  %v26 = vunpack.c.0.s8 %v25
  %v27 = vperm.slane %v22, %v26
  %v28 = vsub.f32 %v17, %v27
  %v29 = vsub.f32 %v18, %v27
  %32 = vst [vmem:[#allocation1] ss:$2 sm:$0xff] %v28
  %v33 = vld.sshfl [vmem:[#allocation1] sm:$0xff pattern:$0x75316420]
  %v34 = vld.sshfl [vmem:[#allocation1 + $0x8] sm:$0xff pattern:$0x75316420]
  %s35 = scalar_lea.vmem [#allocation1], 16
  %36 = vst [vmem:[%s35] ss:$2 sm:$0xff] %v29
  %v37 = vld.sshfl [vmem:[#allocation1 + $0x10] sm:$0xff pattern:$0x75316420]
  %v38 = vld.sshfl [vmem:[#allocation1 + $0x18] sm:$0xff pattern:$0x75316420]
  %vm43 = vcmask 1043456
  %v44 = vsel %vm43, %v33, 0.0
  %v45 = vsel %vm43, %v34, 0.0
  %v46 = vadd.f32 %v44, %v45
  %v47 = vsel %vm43, %v37, 0.0
  %v48 = vadd.f32 %v46, %v47
  %v49 = vsel %vm43, %v38, 0.0
  %v50 = vadd.f32 %v48, %v49
  %51 = vadd.xlane.f32.xlu0 %v50
  %v52 = vpop.xlane.xlu0 %51
  %v53 = vmul.f32 %v52, 0.001953125
  %v54 = vmul.f32 %v28, %v28
  %v55 = vmul.f32 %v29, %v29
  %58 = vst [vmem:[#allocation1] ss:$2 sm:$0xff] %v54
  %v59 = vld.sshfl [vmem:[#allocation1] sm:$0xff pattern:$0x75316420]
  %v60 = vld.sshfl [vmem:[#allocation1 + $0x8] sm:$0xff pattern:$0x75316420]
  %s61 = scalar_lea.vmem [#allocation1], 16
  %62 = vst [vmem:[%s61] ss:$2 sm:$0xff] %v55
  %v63 = vld.sshfl [vmem:[#allocation1 + $0x10] sm:$0xff pattern:$0x75316420]
  %v64 = vld.sshfl [vmem:[#allocation1 + $0x18] sm:$0xff pattern:$0x75316420]
  %v69 = vsel %vm43, %v59, 0.0
  %v70 = vsel %vm43, %v60, 0.0
  %v71 = vadd.f32 %v69, %v70
  %v72 = vsel %vm43, %v63, 0.0
  %v73 = vadd.f32 %v71, %v72
  %v74 = vsel %vm43, %v64, 0.0
  %v75 = vadd.f32 %v73, %v74
  %76 = vadd.xlane.f32.xlu0 %v75
  %v77 = vpop.xlane.xlu0 %76
  %v78 = vmul.f32 %v77, 0.001953125
  %v79 = vmul.f32 %v53, %v53
  %v80 = vsub.f32 %v78, %v79
  %v81 = vmax.f32 %v80, 0.0
  %v82 = vadd.f32 %v81, 0.001
  %v83 = vrsqrt.pop %v82
  %v84 = vmul.f32 %v83, %v82
  %v85 = vmul.f32 %v84, %v83
  %v86 = vmul.f32 0.5, %v85
  %v87 = vsub.f32 1.5, %v86
  %v88 = vmul.f32 %v83, %v87
  %vm89 = vweird.f32 %v82
  %vm90 = vweird.f32 %v83
  %vm91 = vmor %vm89, %vm90
  %v92 = vsel %vm91, %v83, %v88
  %v93 = vld [vmem:[%s0] sm:$0xf]
  %v94 = vmul.f32 %v93, %v92
  %v95 = vld [vmem:[%s1] sm:$0xf]
  %v96 = vadd.f32 %v17, %v53
  %v97 = vmul.f32 %v96, %v94
  %v98 = vsub.f32 %v95, %v97
  %100 = vset.pattern.permute.xlu0 0
  %101 = vperm.xlu0 %100, %v94
  %v102 = vpop.permute.xlu0 %101
  %v104 = vunpack.c.l.s4 839922192
  %v105 = vunpack.c.0.s8 %v104
  %v106 = vperm.slane %v102, %v105
  %v108 = vmul.f32 %v17, %v106
  %v109 = vmul.f32 %v18, %v106
  %111 = vset.pattern.permute.xlu0 0
  %112 = vperm.xlu0 %111, %v98
  %v113 = vpop.permute.xlu0 %112
  %v115 = vunpack.c.l.s4 839922192
  %v116 = vunpack.c.0.s8 %v115
  %v117 = vperm.slane %v113, %v116
  %v119 = vadd.f32 %v108, %v117
  %v120 = vadd.f32 %v109, %v117
  %vm121 = vcmp.ge.f32.partialorder %v119, 0.0
  %vm122 = vcmp.ge.f32.partialorder %v120, 0.0
  %v123 = vld [vmem:[%s2] sm:$0xf]
  %125 = vset.pattern.permute.xlu0 0
  %126 = vperm.xlu0 %125, %v123
  %v127 = vpop.permute.xlu0 %126
  %131 = vst [vmem:[#allocation1] ss:$2 sm:$0xff] %v119
  %v132 = vld.sshfl [vmem:[#allocation1] sm:$0xff pattern:$0x75316420]
  %v133 = vld.sshfl [vmem:[#allocation1 + $0x8] sm:$0xff pattern:$0x75316420]
  %s134 = scalar_lea.vmem [#allocation1], 16
  %135 = vst [vmem:[%s134] ss:$2 sm:$0xff] %v120
  %v136 = vld.sshfl [vmem:[#allocation1 + $0x10] sm:$0xff pattern:$0x75316420]
  %v137 = vld.sshfl [vmem:[#allocation1 + $0x18] sm:$0xff pattern:$0x75316420]
  %v142 = vmul.f32 %v127, %v132
  %v143 = vmul.f32 %v127, %v133
  %v144 = vmul.f32 %v127, %v136
  %v145 = vmul.f32 %v127, %v137
  %v150 = vrot.slane %v143, 4
  %v151 = vrot.slane %v145, 4
  %v152 = vsel %vm43, %v142, %v150
  %v153 = vsel %vm43, %v144, %v151
  %v156 = vsel %vm121, %v119, %v152
  %v157 = vsel %vm122, %v120, %v153
  %158 = vst [vmem:[%s4] sm:$0xff] %v156
  %159 = vst [vmem:[%s4 + $0x8] sm:$0xff] %v157
  // Predicated region
  $region18: #{br_forward.1} parent=0 // pred_check
    _
  $region19: #{br_forward.1} parent=0 // pred_check_branch
    %161 = sbr.rel (0) target = $region21
  $region20: #{br_forward.1} parent=0 // pred_region
    _
  $region21: #{br_forward.1} parent=0 // pred_fallthru
    _
  // Predicated region
  $region22: #{br_forward.1} parent=0 // pred_check
    _
  $region23: #{br_forward.1} parent=0 // pred_check_branch
    %163 = sbr.rel (0) target = $region25
  $region24: #{br_forward.1} parent=0 // pred_region
    _
  $region25: #{br_forward.1} parent=0 // pred_fallthru
    _

</llo_original>
